<compile_context>
chip_gen: v7x
topology: tpu7x:2x2x1
jax: 0.10.0
libtpu: 0.0.40
codegen_flags: <defaults>
</compile_context>

<pallas_src>
import functools

import jax
import jax.numpy as jnp
from jax.experimental import pallas as pl
from jax.experimental.pallas import tpu as pltpu


def _round_up(n, m):
    return ((n + m - 1) // m) * m


def _pad2d(a, rows, cols):
    pr, pc = rows - a.shape[0], cols - a.shape[1]
    if pr or pc:
        a = jnp.pad(a, ((0, pr), (0, pc)))  # zero padding (required for correctness)
    return a


def _mlp_kernel(x_ref, w1_ref, b1_ref, w2_ref, b2_ref, w3_ref, b3_ref, o_ref):
    # bf16 cast happens here, on the VMEM tile (no HBM pre-pass in the wrapper).
    x = x_ref[...].astype(jnp.bfloat16)                              # (TB, K)
    # fc1 + ReLU  (bf16 MXU operands, f32 accumulate, f32 bias/ReLU)
    h1 = jnp.dot(x, w1_ref[...], preferred_element_type=jnp.float32) + b1_ref[...]
    h1 = jnp.maximum(h1, 0.0)
    # fc2 + ReLU
    h2 = jnp.dot(h1.astype(jnp.bfloat16), w2_ref[...],
                 preferred_element_type=jnp.float32) + b2_ref[...]
    h2 = jnp.maximum(h2, 0.0)
    # fc3 (no activation); lane-dense store in o_ref.dtype (bf16 by default)
    y = jnp.dot(h2.astype(jnp.bfloat16), w3_ref[...],
                preferred_element_type=jnp.float32) + b3_ref[...]
    o_ref[...] = y.astype(o_ref.dtype)


@functools.partial(jax.jit,
                   static_argnames=("block_b", "out_dtype", "single_buffer_weights"))
def _forward(x, w1, b1, w2, b2, w3, b3, *, block_b, out_dtype, single_buffer_weights):
    """x: [B, K] f32; w_i pre-transposed to [in, out]; b_i as [1, out]."""
    B, K = x.shape
    H = w1.shape[1]
    O = w3.shape[1]

    # Lane (feature) dims padded to 128-multiples; batch is tiled, never padded in HBM.
    Hp = _round_up(H, 128)
    Op = _round_up(O, 128)

    TB = _round_up(min(block_b, B), 8)          # sublane-aligned batch tile
    if B >= 16:
        # Keep >= 2 grid steps so the "parallel" axis can feed both v7x TensorCores.
        TB = min(TB, _round_up(pl.cdiv(B, 2), 8))
    n_tiles = pl.cdiv(B, TB)                    # Mosaic masks the partial last tile

    bf16 = jnp.bfloat16
    # Weights are tiny and reused: pad/cast them on the host side (one small op each).
    # Only the *output* dims are padded; x keeps its true K, so the fc1 contraction
    # runs at K (Mosaic pads the MXU operand internally).
    w1_p = _pad2d(w1, K, Hp).astype(bf16)       # (K,  Hp)
    w2_p = _pad2d(w2, Hp, Hp).astype(bf16)      # (Hp, Hp)  extra rows are zero
    w3_p = _pad2d(w3, Hp, Op).astype(bf16)      # (Hp, Op)
    b1_p = _pad2d(b1, 1, Hp).astype(jnp.float32)
    b2_p = _pad2d(b2, 1, Hp).astype(jnp.float32)
    b3_p = _pad2d(b3, 1, Op).astype(jnp.float32)

    # Constant-index (VMEM-resident) blocks; single-buffered when supported since
    # they never change between grid steps.
    res_kwargs = ({"pipeline_mode": pl.Buffered(1)} if single_buffer_weights else {})

    def resident(shape):
        return pl.BlockSpec(shape, lambda i: (0,) * len(shape), **res_kwargs)

    out_size = jnp.dtype(out_dtype).itemsize
    # Explicit VMEM budget (v7x: 64 MiB physical, 32 MiB default scoped limit).
    w_bytes = 2 * (K * Hp + Hp * Hp + Hp * Op) + 4 * (2 * Hp + Op)
    w_bufs = 1 if single_buffer_weights else 2
    stream_bytes = 2 * TB * (K * 4 + Op * out_size)                   # dbl-buffered x/out
    inter_bytes = TB * (2 * Hp * 4 + 2 * Hp * 2 + Op * 4 + K * 2)     # h1/h2/y temporaries
    vmem_limit = int(min(64 * 1024 * 1024,
                         max(32 * 1024 * 1024,
                             2 * (w_bufs * w_bytes + stream_bytes + inter_bytes))))

    flops = 2 * B * (K * Hp + Hp * Hp + Hp * Op)
    bytes_accessed = (B * K * 4 + w_bufs * 0 + 2 * (K * Hp + Hp * Hp + Hp * Op)
                      + 4 * (2 * Hp + Op) + B * Op * out_size)

    out_p = pl.pallas_call(
        _mlp_kernel,
        out_shape=jax.ShapeDtypeStruct((B, Op), out_dtype),
        grid=(n_tiles,),
        in_specs=[
            pl.BlockSpec((TB, K), lambda i: (i, 0)),   # x: streamed per batch tile, true K
            resident((K, Hp)), resident((1, Hp)),      # w1, b1: VMEM-resident
            resident((Hp, Hp)), resident((1, Hp)),     # w2, b2
            resident((Hp, Op)), resident((1, Op)),     # w3, b3
        ],
        out_specs=pl.BlockSpec((TB, Op), lambda i: (i, 0)),
        compiler_params=pltpu.CompilerParams(
            dimension_semantics=("parallel",),
            vmem_limit_bytes=vmem_limit),
        cost_estimate=pl.CostEstimate(
            flops=flops, transcendentals=0, bytes_accessed=bytes_accessed),
    )(x, w1_p, b1_p, w2_p, b2_p, w3_p, b3_p)

    # Only the first O lanes are meaningful.  (When O << 128, consumers that can take
    # the padded slab directly should skip this slice to avoid the extra HBM pass.)
    return out_p[:, :O]


_SINGLE_BUFFER_OK = None  # memoized feature check for pl.Buffered(1) on resident blocks


def animal_classifier_forward(x, w1, b1, w2, b2, w3, b3, *,
                              block_b=4096, out_dtype=jnp.bfloat16):
    """Forward pass of AnimalClassifier.  Returns [B, output_dim] in `out_dtype`
    (bf16 by default; pass jnp.float32 only if full-precision logits are required)."""
    global _SINGLE_BUFFER_OK
    if _SINGLE_BUFFER_OK is not False:
        try:
            out = _forward(x, w1, b1, w2, b2, w3, b3, block_b=block_b,
                           out_dtype=out_dtype, single_buffer_weights=True)
            _SINGLE_BUFFER_OK = True
            return out
        except Exception:
            # BlockSpec.pipeline_mode / pl.Buffered(1) unsupported on this JAX build:
            # fall back to default double-buffered resident weights (VMEM-only cost).
            _SINGLE_BUFFER_OK = False
    return _forward(x, w1, b1, w2, b2, w3, b3, block_b=block_b,
                    out_dtype=out_dtype, single_buffer_weights=False)


def init_params(key, input_dim, hidden_dim, output_dim):
    """Deterministic PyTorch-Linear-style init, U[-1/sqrt(fan_in), 1/sqrt(fan_in)].
    Weights are stored as [in, out] (transposed vs PyTorch's [out, in]); biases [1, out]."""
    keys = jax.random.split(key, 6)

    def linear(kw, kb, fan_in, fan_out):
        bound = 1.0 / jnp.sqrt(fan_in)
        w = jax.random.uniform(kw, (fan_in, fan_out), jnp.float32, -bound, bound)
        b = jax.random.uniform(kb, (1, fan_out), jnp.float32, -bound, bound)
        return w, b

    w1, b1 = linear(keys[0], keys[1], input_dim, hidden_dim)
    w2, b2 = linear(keys[2], keys[3], hidden_dim, hidden_dim)
    w3, b3 = linear(keys[4], keys[5], hidden_dim, output_dim)
    return w1, b1, w2, b2, w3, b3


if __name__ == "__main__":
    # Small shapes consistent with the module's forward: x is [batch, input_dim].
    batch, input_dim, hidden_dim, output_dim = 32, 16, 64, 4

    key = jax.random.PRNGKey(0)
    kx, kp = jax.random.split(key)
    x = jax.random.normal(kx, (batch, input_dim), dtype=jnp.float32)
    w1, b1, w2, b2, w3, b3 = init_params(kp, input_dim, hidden_dim, output_dim)

    # Default block_b=4096; the wrapper caps TB at ceil(B/2)=16 here, giving a
    # 2-step "parallel" grid (exercises multi-tile + v7x 2-TC sharding path).
    out = animal_classifier_forward(x, w1, b1, w2, b2, w3, b3)
    out = jax.block_until_ready(out)

    assert out.shape == (batch, output_dim)
    out_f32 = out.astype(jnp.float32)

    # Mixed-precision reference matching the kernel's math (bf16 MXU operands,
    # f32 accumulate, bf16 final store).
    bf16 = jnp.bfloat16
    h1 = jnp.maximum(
        jnp.dot(x.astype(bf16), w1.astype(bf16),
                preferred_element_type=jnp.float32) + b1, 0.0)
    h2 = jnp.maximum(
        jnp.dot(h1.astype(bf16), w2.astype(bf16),
                preferred_element_type=jnp.float32) + b2, 0.0)
    ref = (jnp.dot(h2.astype(bf16), w3.astype(bf16),
                   preferred_element_type=jnp.float32) + b3)
    assert jnp.allclose(out_f32, ref.astype(bf16).astype(jnp.float32),
                        atol=2e-2, rtol=2e-2)

    # Loose sanity check against the pure-f32 forward (PyTorch semantics).
    h1f = jnp.maximum(x @ w1 + b1, 0.0)
    h2f = jnp.maximum(h1f @ w2 + b2, 0.0)
    reff = h2f @ w3 + b3
    assert jnp.allclose(out_f32, reff, atol=5e-2, rtol=5e-2)

    print("KERNEL_OK")
</pallas_src>

<mosaic_0001>
module attributes {stable_mosaic.version = 11 : i64} {
  func.func @_mlp_kernel(%arg0: i32, %arg1: memref<16x16xf32, #tpu.memory_space<vmem>>, %arg2: memref<16x128xbf16, #tpu.memory_space<vmem>>, %arg3: memref<1x128xf32, #tpu.memory_space<vmem>>, %arg4: memref<128x128xbf16, #tpu.memory_space<vmem>>, %arg5: memref<1x128xf32, #tpu.memory_space<vmem>>, %arg6: memref<128x128xbf16, #tpu.memory_space<vmem>>, %arg7: memref<1x128xf32, #tpu.memory_space<vmem>>, %arg8: memref<16x128xbf16, #tpu.memory_space<vmem>>) attributes {dimension_semantics = [#tpu.dimension_semantics<parallel>], iteration_bounds = array<i64: 2>, scalar_prefetch = 0 : i64, scratch_operands = 0 : i64, tpu.core_type = #tpu.core_type<tc>, window_params = [{transform_indices = @transform_0, window_bounds = array<i64: 16, 16>}, {pipeline_mode = #tpu.pipeline_mode<synchronous>, transform_indices = @transform_1, window_bounds = array<i64: 16, 128>}, {pipeline_mode = #tpu.pipeline_mode<synchronous>, transform_indices = @transform_2, window_bounds = array<i64: 1, 128>}, {pipeline_mode = #tpu.pipeline_mode<synchronous>, transform_indices = @transform_3, window_bounds = array<i64: 128, 128>}, {pipeline_mode = #tpu.pipeline_mode<synchronous>, transform_indices = @transform_4, window_bounds = array<i64: 1, 128>}, {pipeline_mode = #tpu.pipeline_mode<synchronous>, transform_indices = @transform_5, window_bounds = array<i64: 128, 128>}, {pipeline_mode = #tpu.pipeline_mode<synchronous>, transform_indices = @transform_6, window_bounds = array<i64: 1, 128>}, {transform_indices = @transform_7, window_bounds = array<i64: 16, 128>}]} {
    %c0 = arith.constant 0 : index
    %c0_0 = arith.constant 0 : index
    %0 = vector.load %arg1[%c0, %c0_0] : memref<16x16xf32, #tpu.memory_space<vmem>>, vector<16x16xf32>
    %1 = arith.truncf %0 : vector<16x16xf32> to vector<16x16xbf16>
    %c0_1 = arith.constant 0 : index
    %c0_2 = arith.constant 0 : index
    %2 = vector.load %arg2[%c0_1, %c0_2] : memref<16x128xbf16, #tpu.memory_space<vmem>>, vector<16x128xbf16>
    %cst = arith.constant dense<0.000000e+00> : vector<16x128xf32>
    %3 = tpu.matmul %1, %2, %cst {dimension_numbers = #tpu.dot_dimension_numbers<[1], [0], [0], [1], [0, 0, 1, 1], [], []>} : vector<16x16xbf16>, vector<16x128xbf16>, vector<16x128xf32> -> vector<16x128xf32>
    %c0_3 = arith.constant 0 : index
    %c0_4 = arith.constant 0 : index
    %4 = vector.load %arg3[%c0_3, %c0_4] : memref<1x128xf32, #tpu.memory_space<vmem>>, vector<1x128xf32>
    %5 = vector.broadcast %4 : vector<1x128xf32> to vector<16x128xf32>
    %6 = arith.addf %3, %5 : vector<16x128xf32>
    %cst_5 = arith.constant 0.000000e+00 : f32
    %7 = vector.broadcast %cst_5 : f32 to vector<16x128xf32>
    %8 = arith.maximumf %6, %7 : vector<16x128xf32>
    %9 = arith.truncf %8 : vector<16x128xf32> to vector<16x128xbf16>
    %c0_6 = arith.constant 0 : index
    %c0_7 = arith.constant 0 : index
    %10 = vector.load %arg4[%c0_6, %c0_7] : memref<128x128xbf16, #tpu.memory_space<vmem>>, vector<128x128xbf16>
    %cst_8 = arith.constant dense<0.000000e+00> : vector<16x128xf32>
    %11 = tpu.matmul %9, %10, %cst_8 {dimension_numbers = #tpu.dot_dimension_numbers<[1], [0], [0], [1], [0, 0, 1, 1], [], []>} : vector<16x128xbf16>, vector<128x128xbf16>, vector<16x128xf32> -> vector<16x128xf32>
    %c0_9 = arith.constant 0 : index
    %c0_10 = arith.constant 0 : index
    %12 = vector.load %arg5[%c0_9, %c0_10] : memref<1x128xf32, #tpu.memory_space<vmem>>, vector<1x128xf32>
    %13 = vector.broadcast %12 : vector<1x128xf32> to vector<16x128xf32>
    %14 = arith.addf %11, %13 : vector<16x128xf32>
    %cst_11 = arith.constant 0.000000e+00 : f32
    %15 = vector.broadcast %cst_11 : f32 to vector<16x128xf32>
    %16 = arith.maximumf %14, %15 : vector<16x128xf32>
    %17 = arith.truncf %16 : vector<16x128xf32> to vector<16x128xbf16>
    %c0_12 = arith.constant 0 : index
    %c0_13 = arith.constant 0 : index
    %18 = vector.load %arg6[%c0_12, %c0_13] : memref<128x128xbf16, #tpu.memory_space<vmem>>, vector<128x128xbf16>
    %cst_14 = arith.constant dense<0.000000e+00> : vector<16x128xf32>
    %19 = tpu.matmul %17, %18, %cst_14 {dimension_numbers = #tpu.dot_dimension_numbers<[1], [0], [0], [1], [0, 0, 1, 1], [], []>} : vector<16x128xbf16>, vector<128x128xbf16>, vector<16x128xf32> -> vector<16x128xf32>
    %c0_15 = arith.constant 0 : index
    %c0_16 = arith.constant 0 : index
    %20 = vector.load %arg7[%c0_15, %c0_16] : memref<1x128xf32, #tpu.memory_space<vmem>>, vector<1x128xf32>
    %21 = vector.broadcast %20 : vector<1x128xf32> to vector<16x128xf32>
    %22 = arith.addf %19, %21 : vector<16x128xf32>
    %23 = arith.truncf %22 : vector<16x128xf32> to vector<16x128xbf16>
    %c0_17 = arith.constant 0 : index
    %c0_18 = arith.constant 0 : index
    %24 = vector.load %arg8[%c0_17, %c0_18] : memref<16x128xbf16, #tpu.memory_space<vmem>>, vector<16x128xbf16>
    tpu.vector_store %arg8[%c0_17, %c0_18], %23 {strides = array<i32>} : memref<16x128xbf16, #tpu.memory_space<vmem>>, vector<16x128xbf16>,
    return
  }
  func.func @transform_0(%arg0: i32) -> (i32, i32) {
    %c0_i32 = arith.constant 0 : i32
    %c0_i32_0 = arith.constant 0 : i32
    return %arg0, %c0_i32 : i32, i32
  }
  func.func @transform_1(%arg0: i32) -> (i32, i32) {
    %c0_i32 = arith.constant 0 : i32
    %c0_i32_0 = arith.constant 0 : i32
    %c0_i32_1 = arith.constant 0 : i32
    return %c0_i32, %c0_i32_0 : i32, i32
  }
  func.func @transform_2(%arg0: i32) -> (i32, i32) {
    %c0_i32 = arith.constant 0 : i32
    %c0_i32_0 = arith.constant 0 : i32
    %c0_i32_1 = arith.constant 0 : i32
    return %c0_i32, %c0_i32_0 : i32, i32
  }
  func.func @transform_3(%arg0: i32) -> (i32, i32) {
    %c0_i32 = arith.constant 0 : i32
    %c0_i32_0 = arith.constant 0 : i32
    %c0_i32_1 = arith.constant 0 : i32
    return %c0_i32, %c0_i32_0 : i32, i32
  }
  func.func @transform_4(%arg0: i32) -> (i32, i32) {
    %c0_i32 = arith.constant 0 : i32
    %c0_i32_0 = arith.constant 0 : i32
    %c0_i32_1 = arith.constant 0 : i32
    return %c0_i32, %c0_i32_0 : i32, i32
  }
  func.func @transform_5(%arg0: i32) -> (i32, i32) {
    %c0_i32 = arith.constant 0 : i32
    %c0_i32_0 = arith.constant 0 : i32
    %c0_i32_1 = arith.constant 0 : i32
    return %c0_i32, %c0_i32_0 : i32, i32
  }
  func.func @transform_6(%arg0: i32) -> (i32, i32) {
    %c0_i32 = arith.constant 0 : i32
    %c0_i32_0 = arith.constant 0 : i32
    %c0_i32_1 = arith.constant 0 : i32
    return %c0_i32, %c0_i32_0 : i32, i32
  }
  func.func @transform_7(%arg0: i32) -> (i32, i32) {
    %c0_i32 = arith.constant 0 : i32
    %c0_i32_0 = arith.constant 0 : i32
    return %arg0, %c0_i32 : i32, i32
  }
}

module attributes {stable_mosaic.version = 11 : i64} {
  func.func @_mlp_kernel(%arg0: i32, %arg1: memref<16x16xf32, #tpu.memory_space<vmem>>, %arg2: memref<16x128xbf16, #tpu.memory_space<vmem>>, %arg3: memref<1x128xf32, #tpu.memory_space<vmem>>, %arg4: memref<128x128xbf16, #tpu.memory_space<vmem>>, %arg5: memref<1x128xf32, #tpu.memory_space<vmem>>, %arg6: memref<128x128xbf16, #tpu.memory_space<vmem>>, %arg7: memref<1x128xf32, #tpu.memory_space<vmem>>, %arg8: memref<16x128xbf16, #tpu.memory_space<vmem>>) attributes {dimension_semantics = [#tpu.dimension_semantics<parallel>], iteration_bounds = array<i64: 2>, scalar_prefetch = 0 : i64, scratch_operands = 0 : i64, tpu.core_type = #tpu.core_type<tc>, window_params = [{transform_indices = @transform_0, window_bounds = array<i64: 16, 16>}, {pipeline_mode = #tpu.pipeline_mode<synchronous>, transform_indices = @transform_1, window_bounds = array<i64: 16, 128>}, {pipeline_mode = #tpu.pipeline_mode<synchronous>, transform_indices = @transform_2, window_bounds = array<i64: 1, 128>}, {pipeline_mode = #tpu.pipeline_mode<synchronous>, transform_indices = @transform_3, window_bounds = array<i64: 128, 128>}, {pipeline_mode = #tpu.pipeline_mode<synchronous>, transform_indices = @transform_4, window_bounds = array<i64: 1, 128>}, {pipeline_mode = #tpu.pipeline_mode<synchronous>, transform_indices = @transform_5, window_bounds = array<i64: 128, 128>}, {pipeline_mode = #tpu.pipeline_mode<synchronous>, transform_indices = @transform_6, window_bounds = array<i64: 1, 128>}, {transform_indices = @transform_7, window_bounds = array<i64: 16, 128>}]} {
    %c0 = arith.constant 0 : index
    %c0_0 = arith.constant 0 : index
    %0 = vector.load %arg1[%c0, %c0_0] : memref<16x16xf32, #tpu.memory_space<vmem>>, vector<16x16xf32>
    %1 = arith.truncf %0 : vector<16x16xf32> to vector<16x16xbf16>
    %c0_1 = arith.constant 0 : index
    %c0_2 = arith.constant 0 : index
    %2 = vector.load %arg2[%c0_1, %c0_2] : memref<16x128xbf16, #tpu.memory_space<vmem>>, vector<16x128xbf16>
    %cst = arith.constant dense<0.000000e+00> : vector<16x128xf32>
    %3 = tpu.matmul %1, %2, %cst {dimension_numbers = #tpu.dot_dimension_numbers<[1], [0], [0], [1], [0, 0, 1, 1], [], []>} : vector<16x16xbf16>, vector<16x128xbf16>, vector<16x128xf32> -> vector<16x128xf32>
    %c0_3 = arith.constant 0 : index
    %c0_4 = arith.constant 0 : index
    %4 = vector.load %arg3[%c0_3, %c0_4] : memref<1x128xf32, #tpu.memory_space<vmem>>, vector<1x128xf32>
    %5 = vector.broadcast %4 : vector<1x128xf32> to vector<16x128xf32>
    %6 = arith.addf %3, %5 : vector<16x128xf32>
    %cst_5 = arith.constant 0.000000e+00 : f32
    %7 = vector.broadcast %cst_5 : f32 to vector<16x128xf32>
    %8 = arith.maximumf %6, %7 : vector<16x128xf32>
    %9 = arith.truncf %8 : vector<16x128xf32> to vector<16x128xbf16>
    %c0_6 = arith.constant 0 : index
    %c0_7 = arith.constant 0 : index
    %10 = vector.load %arg4[%c0_6, %c0_7] : memref<128x128xbf16, #tpu.memory_space<vmem>>, vector<128x128xbf16>
    %cst_8 = arith.constant dense<0.000000e+00> : vector<16x128xf32>
    %11 = tpu.matmul %9, %10, %cst_8 {dimension_numbers = #tpu.dot_dimension_numbers<[1], [0], [0], [1], [0, 0, 1, 1], [], []>} : vector<16x128xbf16>, vector<128x128xbf16>, vector<16x128xf32> -> vector<16x128xf32>
    %c0_9 = arith.constant 0 : index
    %c0_10 = arith.constant 0 : index
    %12 = vector.load %arg5[%c0_9, %c0_10] : memref<1x128xf32, #tpu.memory_space<vmem>>, vector<1x128xf32>
    %13 = vector.broadcast %12 : vector<1x128xf32> to vector<16x128xf32>
    %14 = arith.addf %11, %13 : vector<16x128xf32>
    %cst_11 = arith.constant 0.000000e+00 : f32
    %15 = vector.broadcast %cst_11 : f32 to vector<16x128xf32>
    %16 = arith.maximumf %14, %15 : vector<16x128xf32>
    %17 = arith.truncf %16 : vector<16x128xf32> to vector<16x128xbf16>
    %c0_12 = arith.constant 0 : index
    %c0_13 = arith.constant 0 : index
    %18 = vector.load %arg6[%c0_12, %c0_13] : memref<128x128xbf16, #tpu.memory_space<vmem>>, vector<128x128xbf16>
    %cst_14 = arith.constant dense<0.000000e+00> : vector<16x128xf32>
    %19 = tpu.matmul %17, %18, %cst_14 {dimension_numbers = #tpu.dot_dimension_numbers<[1], [0], [0], [1], [0, 0, 1, 1], [], []>} : vector<16x128xbf16>, vector<128x128xbf16>, vector<16x128xf32> -> vector<16x128xf32>
    %c0_15 = arith.constant 0 : index
    %c0_16 = arith.constant 0 : index
    %20 = vector.load %arg7[%c0_15, %c0_16] : memref<1x128xf32, #tpu.memory_space<vmem>>, vector<1x128xf32>
    %21 = vector.broadcast %20 : vector<1x128xf32> to vector<16x128xf32>
    %22 = arith.addf %19, %21 : vector<16x128xf32>
    %23 = arith.truncf %22 : vector<16x128xf32> to vector<16x128xbf16>
    %c0_17 = arith.constant 0 : index
    %c0_18 = arith.constant 0 : index
    %24 = vector.load %arg8[%c0_17, %c0_18] : memref<16x128xbf16, #tpu.memory_space<vmem>>, vector<16x128xbf16>
    tpu.vector_store %arg8[%c0_17, %c0_18], %23 {strides = array<i32>} : memref<16x128xbf16, #tpu.memory_space<vmem>>, vector<16x128xbf16>,
    return
  }
  func.func @transform_0(%arg0: i32) -> (i32, i32) {
    %c0_i32 = arith.constant 0 : i32
    %c0_i32_0 = arith.constant 0 : i32
    return %arg0, %c0_i32 : i32, i32
  }
  func.func @transform_1(%arg0: i32) -> (i32, i32) {
    %c0_i32 = arith.constant 0 : i32
    %c0_i32_0 = arith.constant 0 : i32
    %c0_i32_1 = arith.constant 0 : i32
    return %c0_i32, %c0_i32_0 : i32, i32
  }
  func.func @transform_2(%arg0: i32) -> (i32, i32) {
    %c0_i32 = arith.constant 0 : i32
    %c0_i32_0 = arith.constant 0 : i32
    %c0_i32_1 = arith.constant 0 : i32
    return %c0_i32, %c0_i32_0 : i32, i32
  }
  func.func @transform_3(%arg0: i32) -> (i32, i32) {
    %c0_i32 = arith.constant 0 : i32
    %c0_i32_0 = arith.constant 0 : i32
    %c0_i32_1 = arith.constant 0 : i32
    return %c0_i32, %c0_i32_0 : i32, i32
  }
  func.func @transform_4(%arg0: i32) -> (i32, i32) {
    %c0_i32 = arith.constant 0 : i32
    %c0_i32_0 = arith.constant 0 : i32
    %c0_i32_1 = arith.constant 0 : i32
    return %c0_i32, %c0_i32_0 : i32, i32
  }
  func.func @transform_5(%arg0: i32) -> (i32, i32) {
    %c0_i32 = arith.constant 0 : i32
    %c0_i32_0 = arith.constant 0 : i32
    %c0_i32_1 = arith.constant 0 : i32
    return %c0_i32, %c0_i32_0 : i32, i32
  }
  func.func @transform_6(%arg0: i32) -> (i32, i32) {
    %c0_i32 = arith.constant 0 : i32
    %c0_i32_0 = arith.constant 0 : i32
    %c0_i32_1 = arith.constant 0 : i32
    return %c0_i32, %c0_i32_0 : i32, i32
  }
  func.func @transform_7(%arg0: i32) -> (i32, i32) {
    %c0_i32 = arith.constant 0 : i32
    %c0_i32_0 = arith.constant 0 : i32
    return %arg0, %c0_i32 : i32, i32
  }
}

</mosaic_0001>

<llo_original>
// kernel: _forward.1
$region0: #{_forward.1}
  #allocation0 [shape = 'u32[]', space=smem, size = 0x4, offset = 0x4, fixed_abs, tag = 'smem constant byte address 0x4 - core index']
  #allocation1 [shape = 'u32[144,128]{1,0:T(1,128)}', space=vmem, size = 0x12000, scoped, tag = 'internal scratch']
  %s0 = inlined_call_operand.vmem [shape: f32[32,16], index: 0, kind: input, shape index: {}]
  %s1 = inlined_call_operand.vmem [shape: bf16[16,128], index: 1, kind: input, shape index: {}]
  %s2 = inlined_call_operand.vmem [shape: f32[1,128], index: 2, kind: input, shape index: {}]
  %s3 = inlined_call_operand.vmem [shape: bf16[128,128], index: 3, kind: input, shape index: {}]
  %s4 = inlined_call_operand.vmem [shape: f32[1,128], index: 4, kind: input, shape index: {}]
  %s5 = inlined_call_operand.vmem [shape: bf16[128,128], index: 5, kind: input, shape index: {}]
  %s6 = inlined_call_operand.vmem [shape: f32[1,128], index: 6, kind: input, shape index: {}]
  %s7 = inlined_call_operand.vmem [shape: bf16[32,128], index: 7, kind: output, shape index: {}]
  %s8 = sld [smem:[#allocation0]]
  $region61: #{_forward.1} parent=0
    _
  %s10 = ssub.s32 1, %s8
  %s11 = scalar_select 0, %s10, %s8
  loop: start=0, step=1, limit=4
  $region2: #{_forward.1} parent=0 // loop_pre_header
    _
  $region3: #{_forward.1} parent=0 // loop_header
    %s13 = sphi 0, %s17
    %p14 = scmp.ge.s32.totalorder %s13, 4
    %s23 = sphi 0, %s25
    %s26 = sphi 0, %s23
    %s27 = sphi 0, %s26
    %s43 = sphi 0, %s27
    %s47 = sphi 0, %s47
    %s49 = sphi 0, %s47
    %s50 = sphi 0, %s49
    %s64 = sphi 0, %s50
    %s68 = sphi 0, %s68
    %s70 = sphi 0, %s68
    %s71 = sphi 0, %s70
    %s85 = sphi 0, %s71
    %s89 = sphi 0, %s89
    %s91 = sphi 0, %s89
    %s92 = sphi 0, %s91
    %s106 = sphi 0, %s92
    %s110 = sphi 0, %s110
    %s112 = sphi 0, %s110
    %s113 = sphi 0, %s112
    %s127 = sphi 0, %s113
    %s131 = sphi 0, %s131
    %s133 = sphi 0, %s131
    %s134 = sphi 0, %s133
    %s148 = sphi 0, %s134
    %s152 = sphi 0, %s152
    %s154 = sphi 0, %s152
    %s155 = sphi 0, %s154
    %s169 = sphi 0, %s155
    %s175 = sphi 0, %s177
    %s178 = sphi 0, %s175
    %s179 = sphi 0, %s178
    %s195 = sphi 0, %s179
  $region4: #{_forward.1} parent=0 // loop_header_branch
    %16 = sbr.rel (%p14) target = $region8
  $region5: #{_forward.1} parent=0 // loop_body
    %s18 = ssub.s32 %s13, 1
    %s19 = ssub.s32 %s13, 2
    %s20 = sadd.s32 %s13, 1
    %s21 = ssub.s32 %s13, %s20
    %p22 = scmp.eq.s32.totalorder %s21, 0
    %s24 = sadd.s32 %s23, 1
    %s25 = scalar_select %p22, %s23, %s24
    %p28 = pneg %p22
    %p29 = scmp.eq.s32.totalorder %s13, 1
    %p30 = por %p28, %p29
    %p31 = scmp.ne.s32.totalorder %s23, %s26
    %p32 = scmp.eq.s32.totalorder %s13, 0
    %p33 = por %p31, %p32
    %p34 = scmp.ne.s32.totalorder %s23, %s26
    %p35 = scmp.eq.s32.totalorder %s18, 1
    %p36 = por %p34, %p35
    %p37 = scmp.ne.s32.totalorder %s26, %s27
    %p38 = scmp.eq.s32.totalorder %s18, 0
    %p39 = por %p37, %p38
    %p40 = scmp.ne.s32.totalorder %s26, %s27
    %p41 = scmp.eq.s32.totalorder %s19, 1
    %p42 = por %p40, %p41
    %p44 = scmp.ne.s32.totalorder %s27, %s43
    %p45 = scmp.eq.s32.totalorder %s19, 0
    %p46 = por %p44, %p45
    %s48 = sadd.s32 %s47, 1
    %p51 = scmp.eq.s32.totalorder %s13, 1
    %p52 = scmp.ne.s32.totalorder %s47, %s49
    %p53 = scmp.eq.s32.totalorder %s13, 0
    %p54 = por %p52, %p53
    %p55 = scmp.ne.s32.totalorder %s47, %s49
    %p56 = scmp.eq.s32.totalorder %s18, 1
    %p57 = por %p55, %p56
    %p58 = scmp.ne.s32.totalorder %s49, %s50
    %p59 = scmp.eq.s32.totalorder %s18, 0
    %p60 = por %p58, %p59
    %p61 = scmp.ne.s32.totalorder %s49, %s50
    %p62 = scmp.eq.s32.totalorder %s19, 1
    %p63 = por %p61, %p62
    %p65 = scmp.ne.s32.totalorder %s50, %s64
    %p66 = scmp.eq.s32.totalorder %s19, 0
    %p67 = por %p65, %p66
    %s69 = sadd.s32 %s68, 1
    %p72 = scmp.eq.s32.totalorder %s13, 1
    %p73 = scmp.ne.s32.totalorder %s68, %s70
    %p74 = scmp.eq.s32.totalorder %s13, 0
    %p75 = por %p73, %p74
    %p76 = scmp.ne.s32.totalorder %s68, %s70
    %p77 = scmp.eq.s32.totalorder %s18, 1
    %p78 = por %p76, %p77
    %p79 = scmp.ne.s32.totalorder %s70, %s71
    %p80 = scmp.eq.s32.totalorder %s18, 0
    %p81 = por %p79, %p80
    %p82 = scmp.ne.s32.totalorder %s70, %s71
    %p83 = scmp.eq.s32.totalorder %s19, 1
    %p84 = por %p82, %p83
    %p86 = scmp.ne.s32.totalorder %s71, %s85
    %p87 = scmp.eq.s32.totalorder %s19, 0
    %p88 = por %p86, %p87
    %s90 = sadd.s32 %s89, 1
    %p93 = scmp.eq.s32.totalorder %s13, 1
    %p94 = scmp.ne.s32.totalorder %s89, %s91
    %p95 = scmp.eq.s32.totalorder %s13, 0
    %p96 = por %p94, %p95
    %p97 = scmp.ne.s32.totalorder %s89, %s91
    %p98 = scmp.eq.s32.totalorder %s18, 1
    %p99 = por %p97, %p98
    %p100 = scmp.ne.s32.totalorder %s91, %s92
    %p101 = scmp.eq.s32.totalorder %s18, 0
    %p102 = por %p100, %p101
    %p103 = scmp.ne.s32.totalorder %s91, %s92
    %p104 = scmp.eq.s32.totalorder %s19, 1
    %p105 = por %p103, %p104
    %p107 = scmp.ne.s32.totalorder %s92, %s106
    %p108 = scmp.eq.s32.totalorder %s19, 0
    %p109 = por %p107, %p108
    %s111 = sadd.s32 %s110, 1
    %p114 = scmp.eq.s32.totalorder %s13, 1
    %p115 = scmp.ne.s32.totalorder %s110, %s112
    %p116 = scmp.eq.s32.totalorder %s13, 0
    %p117 = por %p115, %p116
    %p118 = scmp.ne.s32.totalorder %s110, %s112
    %p119 = scmp.eq.s32.totalorder %s18, 1
    %p120 = por %p118, %p119
    %p121 = scmp.ne.s32.totalorder %s112, %s113
    %p122 = scmp.eq.s32.totalorder %s18, 0
    %p123 = por %p121, %p122
    %p124 = scmp.ne.s32.totalorder %s112, %s113
    %p125 = scmp.eq.s32.totalorder %s19, 1
    %p126 = por %p124, %p125
    %p128 = scmp.ne.s32.totalorder %s113, %s127
    %p129 = scmp.eq.s32.totalorder %s19, 0
    %p130 = por %p128, %p129
    %s132 = sadd.s32 %s131, 1
    %p135 = scmp.eq.s32.totalorder %s13, 1
    %p136 = scmp.ne.s32.totalorder %s131, %s133
    %p137 = scmp.eq.s32.totalorder %s13, 0
    %p138 = por %p136, %p137
    %p139 = scmp.ne.s32.totalorder %s131, %s133
    %p140 = scmp.eq.s32.totalorder %s18, 1
    %p141 = por %p139, %p140
    %p142 = scmp.ne.s32.totalorder %s133, %s134
    %p143 = scmp.eq.s32.totalorder %s18, 0
    %p144 = por %p142, %p143
    %p145 = scmp.ne.s32.totalorder %s133, %s134
    %p146 = scmp.eq.s32.totalorder %s19, 1
    %p147 = por %p145, %p146
    %p149 = scmp.ne.s32.totalorder %s134, %s148
    %p150 = scmp.eq.s32.totalorder %s19, 0
    %p151 = por %p149, %p150
    %s153 = sadd.s32 %s152, 1
    %p156 = scmp.eq.s32.totalorder %s13, 1
    %p157 = scmp.ne.s32.totalorder %s152, %s154
    %p158 = scmp.eq.s32.totalorder %s13, 0
    %p159 = por %p157, %p158
    %p160 = scmp.ne.s32.totalorder %s152, %s154
    %p161 = scmp.eq.s32.totalorder %s18, 1
    %p162 = por %p160, %p161
    %p163 = scmp.ne.s32.totalorder %s154, %s155
    %p164 = scmp.eq.s32.totalorder %s18, 0
    %p165 = por %p163, %p164
    %p166 = scmp.ne.s32.totalorder %s154, %s155
    %p167 = scmp.eq.s32.totalorder %s19, 1
    %p168 = por %p166, %p167
    %p170 = scmp.ne.s32.totalorder %s155, %s169
    %p171 = scmp.eq.s32.totalorder %s19, 0
    %p172 = por %p170, %p171
    %s173 = ssub.s32 %s13, %s20
    %p174 = scmp.eq.s32.totalorder %s173, 0
    %s176 = sadd.s32 %s175, 1
    %s177 = scalar_select %p174, %s175, %s176
    %p180 = pneg %p174
    %p181 = scmp.eq.s32.totalorder %s13, 1
    %p182 = por %p180, %p181
    %p183 = scmp.ne.s32.totalorder %s175, %s178
    %p184 = scmp.eq.s32.totalorder %s13, 0
    %p185 = por %p183, %p184
    %p186 = scmp.ne.s32.totalorder %s175, %s178
    %p187 = scmp.eq.s32.totalorder %s18, 1
    %p188 = por %p186, %p187
    %p189 = scmp.ne.s32.totalorder %s178, %s179
    %p190 = scmp.eq.s32.totalorder %s18, 0
    %p191 = por %p189, %p190
    %p192 = scmp.ne.s32.totalorder %s178, %s179
    %p193 = scmp.eq.s32.totalorder %s19, 1
    %p194 = por %p192, %p193
    %p196 = scmp.ne.s32.totalorder %s179, %s195
    %p197 = scmp.eq.s32.totalorder %s19, 0
    %p198 = por %p196, %p197
    %p199 = scmp.le.s32.totalorder 1, %s13
    %p200 = scmp.lt.s32.totalorder %s13, 3
    %p201 = pnand %p199, %p200
    %p202 = pneg %p201
    // Predicated region
    $region9: #{_forward.1} parent=5 // pred_check
      _
    $region10: #{_forward.1} parent=5 // pred_check_branch
      %204 = sbr.rel (%p201) target = $region12
    $region11: #{_forward.1} parent=5 // pred_region
      %s205 = ssub.s32 %s13, 1
      // Predicated region
      $region13: #{_forward.1} parent=11 // pred_check
        %p206 = pneg %p60
      $region14: #{_forward.1} parent=11 // pred_check_branch
        %208 = sbr.rel (%p206) target = $region16
      $region15: #{_forward.1} parent=11 // pred_region
        _
      $region16: #{_forward.1} parent=11 // pred_fallthru
        _
      // Predicated region
      $region17: #{_forward.1} parent=11 // pred_check
        %p209 = pneg %p81
      $region18: #{_forward.1} parent=11 // pred_check_branch
        %211 = sbr.rel (%p209) target = $region20
      $region19: #{_forward.1} parent=11 // pred_region
        _
      $region20: #{_forward.1} parent=11 // pred_fallthru
        _
      // Predicated region
      $region21: #{_forward.1} parent=11 // pred_check
        %p212 = pneg %p102
      $region22: #{_forward.1} parent=11 // pred_check_branch
        %214 = sbr.rel (%p212) target = $region24
      $region23: #{_forward.1} parent=11 // pred_region
        _
      $region24: #{_forward.1} parent=11 // pred_fallthru
        _
      // Predicated region
      $region25: #{_forward.1} parent=11 // pred_check
        %p215 = pneg %p123
      $region26: #{_forward.1} parent=11 // pred_check_branch
        %217 = sbr.rel (%p215) target = $region28
      $region27: #{_forward.1} parent=11 // pred_region
        _
      $region28: #{_forward.1} parent=11 // pred_fallthru
        _
      // Predicated region
      $region29: #{_forward.1} parent=11 // pred_check
        %p218 = pneg %p144
      $region30: #{_forward.1} parent=11 // pred_check_branch
        %220 = sbr.rel (%p218) target = $region32
      $region31: #{_forward.1} parent=11 // pred_region
        _
      $region32: #{_forward.1} parent=11 // pred_fallthru
        _
      // Predicated region
      $region33: #{_forward.1} parent=11 // pred_check
        %p221 = pneg %p165
      $region34: #{_forward.1} parent=11 // pred_check_branch
        %223 = sbr.rel (%p221) target = $region36
      $region35: #{_forward.1} parent=11 // pred_region
        _
      $region36: #{_forward.1} parent=11 // pred_fallthru
        _
    $region12: #{_forward.1} parent=5 // pred_fallthru
      _
    %p224 = scmp.lt.s32.totalorder %s13, 2
    // Predicated region
    $region37: #{_forward.1} parent=5 // pred_check
      %p225 = pneg %p224
    $region38: #{_forward.1} parent=5 // pred_check_branch
      %227 = sbr.rel (%p225) target = $region40
    $region39: #{_forward.1} parent=5 // pred_region
      // Predicated region
      $region41: #{_forward.1} parent=39 // pred_check
        %p228 = pneg %p33
      $region42: #{_forward.1} parent=39 // pred_check_branch
        %230 = sbr.rel (%p228) target = $region44
      $region43: #{_forward.1} parent=39 // pred_region
        %s231 = smul.u32 2, %s13
        %p232 = scmp.lt.s32.totalorder %s231, 3
        %s233 = scalar_select %p232, %s231, 3
        %s234 = smul.addr %s233, 8
        %s235 = scalar_lea.vmem %s0, %s234
        %s236 = smul.u32 2, %s13
      $region44: #{_forward.1} parent=39 // pred_fallthru
        _
    $region40: #{_forward.1} parent=5 // pred_fallthru
      _
    %p237 = scmp.le.s32.totalorder 1, %s13
    %p238 = scmp.lt.s32.totalorder %s13, 3
    %p239 = pnand %p237, %p238
    %p240 = pneg %p239
    // Predicated region
    $region45: #{_forward.1} parent=5 // pred_check
      _
    $region46: #{_forward.1} parent=5 // pred_check_branch
      %242 = sbr.rel (%p239) target = $region48
    $region47: #{_forward.1} parent=5 // pred_region
      %s243 = ssub.s32 %s13, 1
      %s244 = smul.u32 2, %s18
      %p245 = scmp.lt.s32.totalorder %s244, 3
      %s246 = scalar_select %p245, %s244, 3
      %s247 = smul.addr %s246, 8
      %s248 = scalar_lea.vmem %s0, %s247
      %p249 = pneg %p39
      %p250 = pneg %p36
      %p251 = pneg %p60
      %p252 = pneg %p57
      %p253 = pneg %p81
      %p254 = pneg %p78
      %p255 = pneg %p102
      %p256 = pneg %p99
      %p257 = pneg %p123
      %p258 = pneg %p120
      %p259 = pneg %p144
      %p260 = pneg %p141
      %p261 = pneg %p165
      %p262 = pneg %p162
      %p263 = pneg %p191
      %p264 = pneg %p188
      %s265 = smul.u32 2, %s18
      %p266 = scmp.lt.s32.totalorder %s265, 3
      %s267 = scalar_select %p266, %s265, 3
      %s268 = smul.addr %s267, 4
      %s269 = scalar_lea.vmem %s7, %s268
      %s270 = smul.u32 2, %s18
      %p271 = scmp.lt.s32.totalorder %s270, 3
      %s272 = scalar_select %p271, %s270, 3
      %s273 = smul.addr %s272, 8
      %s274 = scalar_lea.vmem %s0, %s273
      %s275 = smul.u32 2, %s18
      %s276 = smul.u32 2, %s18
      %p277 = scmp.lt.s32.totalorder %s276, 3
      %s278 = scalar_select %p277, %s276, 3
      %s279 = smul.addr %s278, 4
      %s280 = scalar_lea.vmem %s7, %s279
      %s281 = smul.u32 2, %s18
      %v283 = vld [vmem:[%s274] sm:$0xff]
      %v284 = vld [vmem:[%s274 + $0x8] sm:$0xff]
      %v285 = vpack.c.bf16 %v284, %v283
      %v286 = vld [vmem:[%s1] sm:$0xf]
      %v287 = vld [vmem:[%s1 + $0x4] sm:$0xf]
      %v288 = vld [vmem:[%s2] sm:$0x1]
      %v290 = vlaneseq
      %v291 = vshrl.u32 %v290, 7
      %v292 = vsub.s32 0, %v291
      %v293 = vrot.slane %v288, %v292
      %v297 = vunpack.c.l.b16 %v286
      %v298 = vunpack.c.l.b16 %v287
      %v299 = vpack.c.b16 %v298, %v297
      %vm301 = vcmask 130048
      %v303 = vsel %vm301, %v285, 0
      %305 = vmatprep.subr.bf16.mxu0 0
      %306 = vmatpush1.bf16.msra.mxu0 %v299
      %307 = vmatprep.subr.bf16.mxu0 0
      %308 = vmatpush1.bf16.msra.mxu0 0
      %309 = vmatprep.subr.bf16.mxu0 0
      %310 = vmatpush1.bf16.msra.mxu0 0
      %311 = vmatprep.subr.bf16.mxu0 0
      %312 = vmatpush1.bf16.msra.mxu0 0
      %313 = vmatprep.subr.bf16.mxu0 0
      %314 = vmatpush1.bf16.msra.mxu0 0
      %315 = vmatprep.subr.bf16.mxu0 0
      %316 = vmatpush1.bf16.msra.mxu0 0
      %317 = vmatprep.subr.bf16.mxu0 0
      %318 = vmatpush1.bf16.msra.mxu0 0
      %319 = vmatprep.subr.bf16.mxu0 0
      %320 = vmatpush1.bf16.msra.mxu0 0
      %321 = vmatprep.subr.bf16.mxu0 0
      %322 = vmatpush1.bf16.msra.mxu0 0
      %323 = vmatprep.subr.bf16.mxu0 0
      %324 = vmatpush1.bf16.msra.mxu0 0
      %325 = vmatprep.subr.bf16.mxu0 0
      %326 = vmatpush1.bf16.msra.mxu0 0
      %327 = vmatprep.subr.bf16.mxu0 0
      %328 = vmatpush1.bf16.msra.mxu0 0
      %329 = vmatprep.subr.bf16.mxu0 0
      %330 = vmatpush1.bf16.msra.mxu0 0
      %331 = vmatprep.subr.bf16.mxu0 0
      %332 = vmatpush1.bf16.msra.mxu0 0
      %333 = vmatprep.subr.bf16.mxu0 0
      %334 = vmatpush1.bf16.msra.mxu0 0
      %335 = vmatprep.subr.bf16.mxu0 0
      %336 = vmatpush1.bf16.msra.mxu0 0
      %337 = vmatprep.mubr.bf16.mxu0 0
      %338 = vmatmul.mubr.bf16.gmra.mrb[0].mxu0 %v303
      %v339 = vpop.f32.mrb[0].mxu0
      %v340 = vadd.f32 %v293, %v339
      %v341 = vpop.f32.mrb[0].mxu0
      %v342 = vpop.f32.mrb[0].mxu0
      %v343 = vadd.f32 %v293, %v342
      %v344 = vpop.f32.mrb[0].mxu0
      %345 = vdwg.mxu0
      %v346 = vmax.f32 %v340, 0.0
      %v347 = vmax.f32 %v343, 0.0
      %v348 = vpack.c.bf16 %v347, %v346
      %v349 = vld [vmem:[%s3] sm:$0xf]
      %v350 = vld [vmem:[%s3 + $0x4] sm:$0xf]
      %v351 = vld [vmem:[%s3 + $0x8] sm:$0xf]
      %v352 = vld [vmem:[%s3 + $0xc] sm:$0xf]
      %v353 = vld [vmem:[%s3 + $0x10] sm:$0xf]
      %v354 = vld [vmem:[%s3 + $0x14] sm:$0xf]
      %v355 = vld [vmem:[%s3 + $0x18] sm:$0xf]
      %v356 = vld [vmem:[%s3 + $0x1c] sm:$0xf]
      %v357 = vld [vmem:[%s3 + $0x20] sm:$0xf]
      %v358 = vld [vmem:[%s3 + $0x24] sm:$0xf]
      %v359 = vld [vmem:[%s3 + $0x28] sm:$0xf]
      %v360 = vld [vmem:[%s3 + $0x2c] sm:$0xf]
      %v361 = vld [vmem:[%s3 + $0x30] sm:$0xf]
      %v362 = vld [vmem:[%s3 + $0x34] sm:$0xf]
      %v363 = vld [vmem:[%s3 + $0x38] sm:$0xf]
      %v364 = vld [vmem:[%s3 + $0x3c] sm:$0xf]
      %v365 = vld [vmem:[%s4] sm:$0x1]
      %v367 = vlaneseq
      %v368 = vshrl.u32 %v367, 7
      %v369 = vsub.s32 0, %v368
      %v370 = vrot.slane %v365, %v369
      %v388 = vunpack.c.l.b16 %v349
      %v389 = vunpack.c.l.b16 %v350
      %v390 = vunpack.c.l.b16 %v351
      %v391 = vunpack.c.l.b16 %v352
      %v392 = vunpack.c.l.b16 %v353
      %v393 = vunpack.c.l.b16 %v354
      %v394 = vunpack.c.l.b16 %v355
      %v395 = vunpack.c.l.b16 %v356
      %v396 = vunpack.c.l.b16 %v357
      %v397 = vunpack.c.l.b16 %v358
      %v398 = vunpack.c.l.b16 %v359
      %v399 = vunpack.c.l.b16 %v360
      %v400 = vunpack.c.l.b16 %v361
      %v401 = vunpack.c.l.b16 %v362
      %v402 = vunpack.c.l.b16 %v363
      %v403 = vunpack.c.l.b16 %v364
      %v404 = vpack.c.b16 %v389, %v388
      %v405 = vpack.c.b16 %v391, %v390
      %v406 = vpack.c.b16 %v393, %v392
      %v407 = vpack.c.b16 %v395, %v394
      %v408 = vpack.c.b16 %v397, %v396
      %v409 = vpack.c.b16 %v399, %v398
      %v410 = vpack.c.b16 %v401, %v400
      %v411 = vpack.c.b16 %v403, %v402
      %420 = vmatprep.subr.bf16.mxu0 0
      %421 = vmatpush1.bf16.msra.mxu0 %v404
      %422 = vmatprep.subr.bf16.mxu0 0
      %423 = vmatpush1.bf16.msra.mxu0 %v405
      %424 = vmatprep.subr.bf16.mxu0 0
      %425 = vmatpush1.bf16.msra.mxu0 %v406
      %426 = vmatprep.subr.bf16.mxu0 0
      %427 = vmatpush1.bf16.msra.mxu0 %v407
      %428 = vmatprep.subr.bf16.mxu0 0
      %429 = vmatpush1.bf16.msra.mxu0 %v408
      %430 = vmatprep.subr.bf16.mxu0 0
      %431 = vmatpush1.bf16.msra.mxu0 %v409
      %432 = vmatprep.subr.bf16.mxu0 0
      %433 = vmatpush1.bf16.msra.mxu0 %v410
      %434 = vmatprep.subr.bf16.mxu0 0
      %435 = vmatpush1.bf16.msra.mxu0 %v411
      %436 = vmatprep.subr.bf16.mxu0 0
      %437 = vmatpush1.bf16.msra.mxu0 0
      %438 = vmatprep.subr.bf16.mxu0 0
      %439 = vmatpush1.bf16.msra.mxu0 0
      %440 = vmatprep.subr.bf16.mxu0 0
      %441 = vmatpush1.bf16.msra.mxu0 0
      %442 = vmatprep.subr.bf16.mxu0 0
      %443 = vmatpush1.bf16.msra.mxu0 0
      %444 = vmatprep.subr.bf16.mxu0 0
      %445 = vmatpush1.bf16.msra.mxu0 0
      %446 = vmatprep.subr.bf16.mxu0 0
      %447 = vmatpush1.bf16.msra.mxu0 0
      %448 = vmatprep.subr.bf16.mxu0 0
      %449 = vmatpush1.bf16.msra.mxu0 0
      %450 = vmatprep.subr.bf16.mxu0 0
      %451 = vmatpush1.bf16.msra.mxu0 0
      %452 = vmatprep.mubr.bf16.mxu0 0
      %453 = vmatmul.mubr.bf16.gmra.mrb[0].mxu0 %v348
      %v454 = vpop.f32.mrb[0].mxu0
      %v455 = vadd.f32 %v370, %v454
      %v456 = vpop.f32.mrb[0].mxu0
      %v457 = vpop.f32.mrb[0].mxu0
      %v458 = vadd.f32 %v370, %v457
      %v459 = vpop.f32.mrb[0].mxu0
      %460 = vdwg.mxu0
      %v461 = vmax.f32 %v455, 0.0
      %v462 = vmax.f32 %v458, 0.0
      %v463 = vpack.c.bf16 %v462, %v461
      %v464 = vld [vmem:[%s5] sm:$0xf]
      %v465 = vld [vmem:[%s5 + $0x4] sm:$0xf]
      %v466 = vld [vmem:[%s5 + $0x8] sm:$0xf]
      %v467 = vld [vmem:[%s5 + $0xc] sm:$0xf]
      %v468 = vld [vmem:[%s5 + $0x10] sm:$0xf]
      %v469 = vld [vmem:[%s5 + $0x14] sm:$0xf]
      %v470 = vld [vmem:[%s5 + $0x18] sm:$0xf]
      %v471 = vld [vmem:[%s5 + $0x1c] sm:$0xf]
      %v472 = vld [vmem:[%s5 + $0x20] sm:$0xf]
      %v473 = vld [vmem:[%s5 + $0x24] sm:$0xf]
      %v474 = vld [vmem:[%s5 + $0x28] sm:$0xf]
      %v475 = vld [vmem:[%s5 + $0x2c] sm:$0xf]
      %v476 = vld [vmem:[%s5 + $0x30] sm:$0xf]
      %v477 = vld [vmem:[%s5 + $0x34] sm:$0xf]
      %v478 = vld [vmem:[%s5 + $0x38] sm:$0xf]
      %v479 = vld [vmem:[%s5 + $0x3c] sm:$0xf]
      %v480 = vld [vmem:[%s6] sm:$0x1]
      %v482 = vlaneseq
      %v483 = vshrl.u32 %v482, 7
      %v484 = vsub.s32 0, %v483
      %v485 = vrot.slane %v480, %v484
      %v503 = vunpack.c.l.b16 %v464
      %v504 = vunpack.c.l.b16 %v465
      %v505 = vunpack.c.l.b16 %v466
      %v506 = vunpack.c.l.b16 %v467
      %v507 = vunpack.c.l.b16 %v468
      %v508 = vunpack.c.l.b16 %v469
      %v509 = vunpack.c.l.b16 %v470
      %v510 = vunpack.c.l.b16 %v471
      %v511 = vunpack.c.l.b16 %v472
      %v512 = vunpack.c.l.b16 %v473
      %v513 = vunpack.c.l.b16 %v474
      %v514 = vunpack.c.l.b16 %v475
      %v515 = vunpack.c.l.b16 %v476
      %v516 = vunpack.c.l.b16 %v477
      %v517 = vunpack.c.l.b16 %v478
      %v518 = vunpack.c.l.b16 %v479
      %v519 = vpack.c.b16 %v504, %v503
      %v520 = vpack.c.b16 %v506, %v505
      %v521 = vpack.c.b16 %v508, %v507
      %v522 = vpack.c.b16 %v510, %v509
      %v523 = vpack.c.b16 %v512, %v511
      %v524 = vpack.c.b16 %v514, %v513
      %v525 = vpack.c.b16 %v516, %v515
      %v526 = vpack.c.b16 %v518, %v517
      %535 = vmatprep.subr.bf16.mxu0 0
      %536 = vmatpush1.bf16.msra.mxu0 %v519
      %537 = vmatprep.subr.bf16.mxu0 0
      %538 = vmatpush1.bf16.msra.mxu0 %v520
      %539 = vmatprep.subr.bf16.mxu0 0
      %540 = vmatpush1.bf16.msra.mxu0 %v521
      %541 = vmatprep.subr.bf16.mxu0 0
      %542 = vmatpush1.bf16.msra.mxu0 %v522
      %543 = vmatprep.subr.bf16.mxu0 0
      %544 = vmatpush1.bf16.msra.mxu0 %v523
      %545 = vmatprep.subr.bf16.mxu0 0
      %546 = vmatpush1.bf16.msra.mxu0 %v524
      %547 = vmatprep.subr.bf16.mxu0 0
      %548 = vmatpush1.bf16.msra.mxu0 %v525
      %549 = vmatprep.subr.bf16.mxu0 0
      %550 = vmatpush1.bf16.msra.mxu0 %v526
      %551 = vmatprep.subr.bf16.mxu0 0
      %552 = vmatpush1.bf16.msra.mxu0 0
      %553 = vmatprep.subr.bf16.mxu0 0
      %554 = vmatpush1.bf16.msra.mxu0 0
      %555 = vmatprep.subr.bf16.mxu0 0
      %556 = vmatpush1.bf16.msra.mxu0 0
      %557 = vmatprep.subr.bf16.mxu0 0
      %558 = vmatpush1.bf16.msra.mxu0 0
      %559 = vmatprep.subr.bf16.mxu0 0
      %560 = vmatpush1.bf16.msra.mxu0 0
      %561 = vmatprep.subr.bf16.mxu0 0
      %562 = vmatpush1.bf16.msra.mxu0 0
      %563 = vmatprep.subr.bf16.mxu0 0
      %564 = vmatpush1.bf16.msra.mxu0 0
      %565 = vmatprep.subr.bf16.mxu0 0
      %566 = vmatpush1.bf16.msra.mxu0 0
      %567 = vmatprep.mubr.bf16.mxu0 0
      %568 = vmatmul.mubr.bf16.gmra.mrb[0].mxu0 %v463
      %v569 = vpop.f32.mrb[0].mxu0
      %v570 = vadd.f32 %v485, %v569
      %v571 = vpop.f32.mrb[0].mxu0
      %v572 = vpop.f32.mrb[0].mxu0
      %v573 = vadd.f32 %v485, %v572
      %v574 = vpop.f32.mrb[0].mxu0
      %575 = vdwg.mxu0
      %v576 = vpack.c.bf16 %v573, %v570
      %v578 = vunpack.c.l.b16 %v576
      %v579 = vunpack.c.h.b16 %v576
      %v580 = vpack.c.b16 %v578, %v578
      %v581 = vpack.c.b16 %v579, %v579
      %584 = vst [vmem:[%s280] sm:$0xf] %v580
      %585 = vst [vmem:[%s280 + $0x4] sm:$0xf] %v581
      %s586 = smul.u32 2, %s18
      %p587 = scmp.lt.s32.totalorder %s586, 3
      %s588 = scalar_select %p587, %s586, 3
      %s589 = smul.addr %s588, 4
      %s590 = scalar_lea.vmem %s7, %s589
      // Predicated region
      $region49: #{_forward.1} parent=47 // pred_check
        %p591 = pneg %p188
      $region50: #{_forward.1} parent=47 // pred_check_branch
        %593 = sbr.rel (%p591) target = $region52
      $region51: #{_forward.1} parent=47 // pred_region
        %s594 = smul.u32 2, %s18
      $region52: #{_forward.1} parent=47 // pred_fallthru
        _
    $region48: #{_forward.1} parent=5 // pred_fallthru
      _
    %p595 = scmp.le.s32.totalorder 2, %s13
    // Predicated region
    $region53: #{_forward.1} parent=5 // pred_check
      %p596 = pneg %p595
    $region54: #{_forward.1} parent=5 // pred_check_branch
      %598 = sbr.rel (%p596) target = $region56
    $region55: #{_forward.1} parent=5 // pred_region
      %s599 = ssub.s32 %s13, 2
      // Predicated region
      $region57: #{_forward.1} parent=55 // pred_check
        %p600 = pneg %p194
      $region58: #{_forward.1} parent=55 // pred_check_branch
        %602 = sbr.rel (%p600) target = $region60
      $region59: #{_forward.1} parent=55 // pred_region
        %s603 = smul.u32 2, %s19
        %p604 = scmp.lt.s32.totalorder %s603, 3
        %s605 = scalar_select %p604, %s603, 3
        %s606 = smul.addr %s605, 4
        %s607 = scalar_lea.vmem %s7, %s606
      $region60: #{_forward.1} parent=55 // pred_fallthru
        _
    $region56: #{_forward.1} parent=5 // pred_fallthru
      _
  $region6: #{_forward.1} parent=0 // loop_footer
    %s17 = sadd.s32 1, %s13
  $region7: #{_forward.1} parent=0 // loop_footer_branch
    %12 = sbr.rel target = $region3
  $region8: #{_forward.1} parent=0 // loop_exit
    _

// kernel: _forward.1
$region0: #{_forward.1}
  #allocation0 [shape = 'u32[]', space=smem, size = 0x4, offset = 0x4, fixed_abs, tag = 'smem constant byte address 0x4 - core index']
  #allocation1 [shape = 'u32[144,128]{1,0:T(1,128)}', space=vmem, size = 0x12000, scoped, tag = 'internal scratch']
  %s0 = inlined_call_operand.vmem [shape: f32[32,16], index: 0, kind: input, shape index: {}]
  %s1 = inlined_call_operand.vmem [shape: bf16[16,128], index: 1, kind: input, shape index: {}]
  %s2 = inlined_call_operand.vmem [shape: f32[1,128], index: 2, kind: input, shape index: {}]
  %s3 = inlined_call_operand.vmem [shape: bf16[128,128], index: 3, kind: input, shape index: {}]
  %s4 = inlined_call_operand.vmem [shape: f32[1,128], index: 4, kind: input, shape index: {}]
  %s5 = inlined_call_operand.vmem [shape: bf16[128,128], index: 5, kind: input, shape index: {}]
  %s6 = inlined_call_operand.vmem [shape: f32[1,128], index: 6, kind: input, shape index: {}]
  %s7 = inlined_call_operand.vmem [shape: bf16[32,128], index: 7, kind: output, shape index: {}]
  %s8 = sld [smem:[#allocation0]]
  $region61: #{_forward.1} parent=0
    _
  %s10 = ssub.s32 1, %s8
  %s11 = scalar_select 0, %s10, %s8
  loop: start=0, step=1, limit=4
  $region2: #{_forward.1} parent=0 // loop_pre_header
    _
  $region3: #{_forward.1} parent=0 // loop_header
    %s13 = sphi 0, %s17
    %p14 = scmp.ge.s32.totalorder %s13, 4
    %s23 = sphi 0, %s25
    %s26 = sphi 0, %s23
    %s27 = sphi 0, %s26
    %s43 = sphi 0, %s27
    %s47 = sphi 0, %s47
    %s49 = sphi 0, %s47
    %s50 = sphi 0, %s49
    %s64 = sphi 0, %s50
    %s68 = sphi 0, %s68
    %s70 = sphi 0, %s68
    %s71 = sphi 0, %s70
    %s85 = sphi 0, %s71
    %s89 = sphi 0, %s89
    %s91 = sphi 0, %s89
    %s92 = sphi 0, %s91
    %s106 = sphi 0, %s92
    %s110 = sphi 0, %s110
    %s112 = sphi 0, %s110
    %s113 = sphi 0, %s112
    %s127 = sphi 0, %s113
    %s131 = sphi 0, %s131
    %s133 = sphi 0, %s131
    %s134 = sphi 0, %s133
    %s148 = sphi 0, %s134
    %s152 = sphi 0, %s152
    %s154 = sphi 0, %s152
    %s155 = sphi 0, %s154
    %s169 = sphi 0, %s155
    %s175 = sphi 0, %s177
    %s178 = sphi 0, %s175
    %s179 = sphi 0, %s178
    %s195 = sphi 0, %s179
  $region4: #{_forward.1} parent=0 // loop_header_branch
    %16 = sbr.rel (%p14) target = $region8
  $region5: #{_forward.1} parent=0 // loop_body
    %s18 = ssub.s32 %s13, 1
    %s19 = ssub.s32 %s13, 2
    %s20 = sadd.s32 %s13, 1
    %s21 = ssub.s32 %s13, %s20
    %p22 = scmp.eq.s32.totalorder %s21, 0
    %s24 = sadd.s32 %s23, 1
    %s25 = scalar_select %p22, %s23, %s24
    %p28 = pneg %p22
    %p29 = scmp.eq.s32.totalorder %s13, 1
    %p30 = por %p28, %p29
    %p31 = scmp.ne.s32.totalorder %s23, %s26
    %p32 = scmp.eq.s32.totalorder %s13, 0
    %p33 = por %p31, %p32
    %p34 = scmp.ne.s32.totalorder %s23, %s26
    %p35 = scmp.eq.s32.totalorder %s18, 1
    %p36 = por %p34, %p35
    %p37 = scmp.ne.s32.totalorder %s26, %s27
    %p38 = scmp.eq.s32.totalorder %s18, 0
    %p39 = por %p37, %p38
    %p40 = scmp.ne.s32.totalorder %s26, %s27
    %p41 = scmp.eq.s32.totalorder %s19, 1
    %p42 = por %p40, %p41
    %p44 = scmp.ne.s32.totalorder %s27, %s43
    %p45 = scmp.eq.s32.totalorder %s19, 0
    %p46 = por %p44, %p45
    %s48 = sadd.s32 %s47, 1
    %p51 = scmp.eq.s32.totalorder %s13, 1
    %p52 = scmp.ne.s32.totalorder %s47, %s49
    %p53 = scmp.eq.s32.totalorder %s13, 0
    %p54 = por %p52, %p53
    %p55 = scmp.ne.s32.totalorder %s47, %s49
    %p56 = scmp.eq.s32.totalorder %s18, 1
    %p57 = por %p55, %p56
    %p58 = scmp.ne.s32.totalorder %s49, %s50
    %p59 = scmp.eq.s32.totalorder %s18, 0
    %p60 = por %p58, %p59
    %p61 = scmp.ne.s32.totalorder %s49, %s50
    %p62 = scmp.eq.s32.totalorder %s19, 1
    %p63 = por %p61, %p62
    %p65 = scmp.ne.s32.totalorder %s50, %s64
    %p66 = scmp.eq.s32.totalorder %s19, 0
    %p67 = por %p65, %p66
    %s69 = sadd.s32 %s68, 1
    %p72 = scmp.eq.s32.totalorder %s13, 1
    %p73 = scmp.ne.s32.totalorder %s68, %s70
    %p74 = scmp.eq.s32.totalorder %s13, 0
    %p75 = por %p73, %p74
    %p76 = scmp.ne.s32.totalorder %s68, %s70
    %p77 = scmp.eq.s32.totalorder %s18, 1
    %p78 = por %p76, %p77
    %p79 = scmp.ne.s32.totalorder %s70, %s71
    %p80 = scmp.eq.s32.totalorder %s18, 0
    %p81 = por %p79, %p80
    %p82 = scmp.ne.s32.totalorder %s70, %s71
    %p83 = scmp.eq.s32.totalorder %s19, 1
    %p84 = por %p82, %p83
    %p86 = scmp.ne.s32.totalorder %s71, %s85
    %p87 = scmp.eq.s32.totalorder %s19, 0
    %p88 = por %p86, %p87
    %s90 = sadd.s32 %s89, 1
    %p93 = scmp.eq.s32.totalorder %s13, 1
    %p94 = scmp.ne.s32.totalorder %s89, %s91
    %p95 = scmp.eq.s32.totalorder %s13, 0
    %p96 = por %p94, %p95
    %p97 = scmp.ne.s32.totalorder %s89, %s91
    %p98 = scmp.eq.s32.totalorder %s18, 1
    %p99 = por %p97, %p98
    %p100 = scmp.ne.s32.totalorder %s91, %s92
    %p101 = scmp.eq.s32.totalorder %s18, 0
    %p102 = por %p100, %p101
    %p103 = scmp.ne.s32.totalorder %s91, %s92
    %p104 = scmp.eq.s32.totalorder %s19, 1
    %p105 = por %p103, %p104
    %p107 = scmp.ne.s32.totalorder %s92, %s106
    %p108 = scmp.eq.s32.totalorder %s19, 0
    %p109 = por %p107, %p108
    %s111 = sadd.s32 %s110, 1
    %p114 = scmp.eq.s32.totalorder %s13, 1
    %p115 = scmp.ne.s32.totalorder %s110, %s112
    %p116 = scmp.eq.s32.totalorder %s13, 0
    %p117 = por %p115, %p116
    %p118 = scmp.ne.s32.totalorder %s110, %s112
    %p119 = scmp.eq.s32.totalorder %s18, 1
    %p120 = por %p118, %p119
    %p121 = scmp.ne.s32.totalorder %s112, %s113
    %p122 = scmp.eq.s32.totalorder %s18, 0
    %p123 = por %p121, %p122
    %p124 = scmp.ne.s32.totalorder %s112, %s113
    %p125 = scmp.eq.s32.totalorder %s19, 1
    %p126 = por %p124, %p125
    %p128 = scmp.ne.s32.totalorder %s113, %s127
    %p129 = scmp.eq.s32.totalorder %s19, 0
    %p130 = por %p128, %p129
    %s132 = sadd.s32 %s131, 1
    %p135 = scmp.eq.s32.totalorder %s13, 1
    %p136 = scmp.ne.s32.totalorder %s131, %s133
    %p137 = scmp.eq.s32.totalorder %s13, 0
    %p138 = por %p136, %p137
    %p139 = scmp.ne.s32.totalorder %s131, %s133
    %p140 = scmp.eq.s32.totalorder %s18, 1
    %p141 = por %p139, %p140
    %p142 = scmp.ne.s32.totalorder %s133, %s134
    %p143 = scmp.eq.s32.totalorder %s18, 0
    %p144 = por %p142, %p143
    %p145 = scmp.ne.s32.totalorder %s133, %s134
    %p146 = scmp.eq.s32.totalorder %s19, 1
    %p147 = por %p145, %p146
    %p149 = scmp.ne.s32.totalorder %s134, %s148
    %p150 = scmp.eq.s32.totalorder %s19, 0
    %p151 = por %p149, %p150
    %s153 = sadd.s32 %s152, 1
    %p156 = scmp.eq.s32.totalorder %s13, 1
    %p157 = scmp.ne.s32.totalorder %s152, %s154
    %p158 = scmp.eq.s32.totalorder %s13, 0
    %p159 = por %p157, %p158
    %p160 = scmp.ne.s32.totalorder %s152, %s154
    %p161 = scmp.eq.s32.totalorder %s18, 1
    %p162 = por %p160, %p161
    %p163 = scmp.ne.s32.totalorder %s154, %s155
    %p164 = scmp.eq.s32.totalorder %s18, 0
    %p165 = por %p163, %p164
    %p166 = scmp.ne.s32.totalorder %s154, %s155
    %p167 = scmp.eq.s32.totalorder %s19, 1
    %p168 = por %p166, %p167
    %p170 = scmp.ne.s32.totalorder %s155, %s169
    %p171 = scmp.eq.s32.totalorder %s19, 0
    %p172 = por %p170, %p171
    %s173 = ssub.s32 %s13, %s20
    %p174 = scmp.eq.s32.totalorder %s173, 0
    %s176 = sadd.s32 %s175, 1
    %s177 = scalar_select %p174, %s175, %s176
    %p180 = pneg %p174
    %p181 = scmp.eq.s32.totalorder %s13, 1
    %p182 = por %p180, %p181
    %p183 = scmp.ne.s32.totalorder %s175, %s178
    %p184 = scmp.eq.s32.totalorder %s13, 0
    %p185 = por %p183, %p184
    %p186 = scmp.ne.s32.totalorder %s175, %s178
    %p187 = scmp.eq.s32.totalorder %s18, 1
    %p188 = por %p186, %p187
    %p189 = scmp.ne.s32.totalorder %s178, %s179
    %p190 = scmp.eq.s32.totalorder %s18, 0
    %p191 = por %p189, %p190
    %p192 = scmp.ne.s32.totalorder %s178, %s179
    %p193 = scmp.eq.s32.totalorder %s19, 1
    %p194 = por %p192, %p193
    %p196 = scmp.ne.s32.totalorder %s179, %s195
    %p197 = scmp.eq.s32.totalorder %s19, 0
    %p198 = por %p196, %p197
    %p199 = scmp.le.s32.totalorder 1, %s13
    %p200 = scmp.lt.s32.totalorder %s13, 3
    %p201 = pnand %p199, %p200
    %p202 = pneg %p201
    // Predicated region
    $region9: #{_forward.1} parent=5 // pred_check
      _
    $region10: #{_forward.1} parent=5 // pred_check_branch
      %204 = sbr.rel (%p201) target = $region12
    $region11: #{_forward.1} parent=5 // pred_region
      %s205 = ssub.s32 %s13, 1
      // Predicated region
      $region13: #{_forward.1} parent=11 // pred_check
        %p206 = pneg %p60
      $region14: #{_forward.1} parent=11 // pred_check_branch
        %208 = sbr.rel (%p206) target = $region16
      $region15: #{_forward.1} parent=11 // pred_region
        _
      $region16: #{_forward.1} parent=11 // pred_fallthru
        _
      // Predicated region
      $region17: #{_forward.1} parent=11 // pred_check
        %p209 = pneg %p81
      $region18: #{_forward.1} parent=11 // pred_check_branch
        %211 = sbr.rel (%p209) target = $region20
      $region19: #{_forward.1} parent=11 // pred_region
        _
      $region20: #{_forward.1} parent=11 // pred_fallthru
        _
      // Predicated region
      $region21: #{_forward.1} parent=11 // pred_check
        %p212 = pneg %p102
      $region22: #{_forward.1} parent=11 // pred_check_branch
        %214 = sbr.rel (%p212) target = $region24
      $region23: #{_forward.1} parent=11 // pred_region
        _
      $region24: #{_forward.1} parent=11 // pred_fallthru
        _
      // Predicated region
      $region25: #{_forward.1} parent=11 // pred_check
        %p215 = pneg %p123
      $region26: #{_forward.1} parent=11 // pred_check_branch
        %217 = sbr.rel (%p215) target = $region28
      $region27: #{_forward.1} parent=11 // pred_region
        _
      $region28: #{_forward.1} parent=11 // pred_fallthru
        _
      // Predicated region
      $region29: #{_forward.1} parent=11 // pred_check
        %p218 = pneg %p144
      $region30: #{_forward.1} parent=11 // pred_check_branch
        %220 = sbr.rel (%p218) target = $region32
      $region31: #{_forward.1} parent=11 // pred_region
        _
      $region32: #{_forward.1} parent=11 // pred_fallthru
        _
      // Predicated region
      $region33: #{_forward.1} parent=11 // pred_check
        %p221 = pneg %p165
      $region34: #{_forward.1} parent=11 // pred_check_branch
        %223 = sbr.rel (%p221) target = $region36
      $region35: #{_forward.1} parent=11 // pred_region
        _
      $region36: #{_forward.1} parent=11 // pred_fallthru
        _
    $region12: #{_forward.1} parent=5 // pred_fallthru
      _
    %p224 = scmp.lt.s32.totalorder %s13, 2
    // Predicated region
    $region37: #{_forward.1} parent=5 // pred_check
      %p225 = pneg %p224
    $region38: #{_forward.1} parent=5 // pred_check_branch
      %227 = sbr.rel (%p225) target = $region40
    $region39: #{_forward.1} parent=5 // pred_region
      // Predicated region
      $region41: #{_forward.1} parent=39 // pred_check
        %p228 = pneg %p33
      $region42: #{_forward.1} parent=39 // pred_check_branch
        %230 = sbr.rel (%p228) target = $region44
      $region43: #{_forward.1} parent=39 // pred_region
        %s231 = smul.u32 2, %s13
        %p232 = scmp.lt.s32.totalorder %s231, 3
        %s233 = scalar_select %p232, %s231, 3
        %s234 = smul.addr %s233, 8
        %s235 = scalar_lea.vmem %s0, %s234
        %s236 = smul.u32 2, %s13
      $region44: #{_forward.1} parent=39 // pred_fallthru
        _
    $region40: #{_forward.1} parent=5 // pred_fallthru
      _
    %p237 = scmp.le.s32.totalorder 1, %s13
    %p238 = scmp.lt.s32.totalorder %s13, 3
    %p239 = pnand %p237, %p238
    %p240 = pneg %p239
    // Predicated region
    $region45: #{_forward.1} parent=5 // pred_check
      _
    $region46: #{_forward.1} parent=5 // pred_check_branch
      %242 = sbr.rel (%p239) target = $region48
    $region47: #{_forward.1} parent=5 // pred_region
      %s243 = ssub.s32 %s13, 1
      %s244 = smul.u32 2, %s18
      %p245 = scmp.lt.s32.totalorder %s244, 3
      %s246 = scalar_select %p245, %s244, 3
      %s247 = smul.addr %s246, 8
      %s248 = scalar_lea.vmem %s0, %s247
      %p249 = pneg %p39
      %p250 = pneg %p36
      %p251 = pneg %p60
      %p252 = pneg %p57
      %p253 = pneg %p81
      %p254 = pneg %p78
      %p255 = pneg %p102
      %p256 = pneg %p99
      %p257 = pneg %p123
      %p258 = pneg %p120
      %p259 = pneg %p144
      %p260 = pneg %p141
      %p261 = pneg %p165
      %p262 = pneg %p162
      %p263 = pneg %p191
      %p264 = pneg %p188
      %s265 = smul.u32 2, %s18
      %p266 = scmp.lt.s32.totalorder %s265, 3
      %s267 = scalar_select %p266, %s265, 3
      %s268 = smul.addr %s267, 4
      %s269 = scalar_lea.vmem %s7, %s268
      %s270 = smul.u32 2, %s18
      %p271 = scmp.lt.s32.totalorder %s270, 3
      %s272 = scalar_select %p271, %s270, 3
      %s273 = smul.addr %s272, 8
      %s274 = scalar_lea.vmem %s0, %s273
      %s275 = smul.u32 2, %s18
      %s276 = smul.u32 2, %s18
      %p277 = scmp.lt.s32.totalorder %s276, 3
      %s278 = scalar_select %p277, %s276, 3
      %s279 = smul.addr %s278, 4
      %s280 = scalar_lea.vmem %s7, %s279
      %s281 = smul.u32 2, %s18
      %v283 = vld [vmem:[%s274] sm:$0xff]
      %v284 = vld [vmem:[%s274 + $0x8] sm:$0xff]
      %v285 = vpack.c.bf16 %v284, %v283
      %v286 = vld [vmem:[%s1] sm:$0xf]
      %v287 = vld [vmem:[%s1 + $0x4] sm:$0xf]
      %v288 = vld [vmem:[%s2] sm:$0x1]
      %v290 = vlaneseq
      %v291 = vshrl.u32 %v290, 7
      %v292 = vsub.s32 0, %v291
      %v293 = vrot.slane %v288, %v292
      %v297 = vunpack.c.l.b16 %v286
      %v298 = vunpack.c.l.b16 %v287
      %v299 = vpack.c.b16 %v298, %v297
      %vm301 = vcmask 130048
      %v303 = vsel %vm301, %v285, 0
      %305 = vmatprep.subr.bf16.mxu0 0
      %306 = vmatpush1.bf16.msra.mxu0 %v299
      %307 = vmatprep.subr.bf16.mxu0 0
      %308 = vmatpush1.bf16.msra.mxu0 0
      %309 = vmatprep.subr.bf16.mxu0 0
      %310 = vmatpush1.bf16.msra.mxu0 0
      %311 = vmatprep.subr.bf16.mxu0 0
      %312 = vmatpush1.bf16.msra.mxu0 0
      %313 = vmatprep.subr.bf16.mxu0 0
      %314 = vmatpush1.bf16.msra.mxu0 0
      %315 = vmatprep.subr.bf16.mxu0 0
      %316 = vmatpush1.bf16.msra.mxu0 0
      %317 = vmatprep.subr.bf16.mxu0 0
      %318 = vmatpush1.bf16.msra.mxu0 0
      %319 = vmatprep.subr.bf16.mxu0 0
      %320 = vmatpush1.bf16.msra.mxu0 0
      %321 = vmatprep.subr.bf16.mxu0 0
      %322 = vmatpush1.bf16.msra.mxu0 0
      %323 = vmatprep.subr.bf16.mxu0 0
      %324 = vmatpush1.bf16.msra.mxu0 0
      %325 = vmatprep.subr.bf16.mxu0 0
      %326 = vmatpush1.bf16.msra.mxu0 0
      %327 = vmatprep.subr.bf16.mxu0 0
      %328 = vmatpush1.bf16.msra.mxu0 0
      %329 = vmatprep.subr.bf16.mxu0 0
      %330 = vmatpush1.bf16.msra.mxu0 0
      %331 = vmatprep.subr.bf16.mxu0 0
      %332 = vmatpush1.bf16.msra.mxu0 0
      %333 = vmatprep.subr.bf16.mxu0 0
      %334 = vmatpush1.bf16.msra.mxu0 0
      %335 = vmatprep.subr.bf16.mxu0 0
      %336 = vmatpush1.bf16.msra.mxu0 0
      %337 = vmatprep.mubr.bf16.mxu0 0
      %338 = vmatmul.mubr.bf16.gmra.mrb[0].mxu0 %v303
      %v339 = vpop.f32.mrb[0].mxu0
      %v340 = vadd.f32 %v293, %v339
      %v341 = vpop.f32.mrb[0].mxu0
      %v342 = vpop.f32.mrb[0].mxu0
      %v343 = vadd.f32 %v293, %v342
      %v344 = vpop.f32.mrb[0].mxu0
      %345 = vdwg.mxu0
      %v346 = vmax.f32 %v340, 0.0
      %v347 = vmax.f32 %v343, 0.0
      %v348 = vpack.c.bf16 %v347, %v346
      %v349 = vld [vmem:[%s3] sm:$0xf]
      %v350 = vld [vmem:[%s3 + $0x4] sm:$0xf]
      %v351 = vld [vmem:[%s3 + $0x8] sm:$0xf]
      %v352 = vld [vmem:[%s3 + $0xc] sm:$0xf]
      %v353 = vld [vmem:[%s3 + $0x10] sm:$0xf]
      %v354 = vld [vmem:[%s3 + $0x14] sm:$0xf]
      %v355 = vld [vmem:[%s3 + $0x18] sm:$0xf]
      %v356 = vld [vmem:[%s3 + $0x1c] sm:$0xf]
      %v357 = vld [vmem:[%s3 + $0x20] sm:$0xf]
      %v358 = vld [vmem:[%s3 + $0x24] sm:$0xf]
      %v359 = vld [vmem:[%s3 + $0x28] sm:$0xf]
      %v360 = vld [vmem:[%s3 + $0x2c] sm:$0xf]
      %v361 = vld [vmem:[%s3 + $0x30] sm:$0xf]
      %v362 = vld [vmem:[%s3 + $0x34] sm:$0xf]
      %v363 = vld [vmem:[%s3 + $0x38] sm:$0xf]
      %v364 = vld [vmem:[%s3 + $0x3c] sm:$0xf]
      %v365 = vld [vmem:[%s4] sm:$0x1]
      %v367 = vlaneseq
      %v368 = vshrl.u32 %v367, 7
      %v369 = vsub.s32 0, %v368
      %v370 = vrot.slane %v365, %v369
      %v388 = vunpack.c.l.b16 %v349
      %v389 = vunpack.c.l.b16 %v350
      %v390 = vunpack.c.l.b16 %v351
      %v391 = vunpack.c.l.b16 %v352
      %v392 = vunpack.c.l.b16 %v353
      %v393 = vunpack.c.l.b16 %v354
      %v394 = vunpack.c.l.b16 %v355
      %v395 = vunpack.c.l.b16 %v356
      %v396 = vunpack.c.l.b16 %v357
      %v397 = vunpack.c.l.b16 %v358
      %v398 = vunpack.c.l.b16 %v359
      %v399 = vunpack.c.l.b16 %v360
      %v400 = vunpack.c.l.b16 %v361
      %v401 = vunpack.c.l.b16 %v362
      %v402 = vunpack.c.l.b16 %v363
      %v403 = vunpack.c.l.b16 %v364
      %v404 = vpack.c.b16 %v389, %v388
      %v405 = vpack.c.b16 %v391, %v390
      %v406 = vpack.c.b16 %v393, %v392
      %v407 = vpack.c.b16 %v395, %v394
      %v408 = vpack.c.b16 %v397, %v396
      %v409 = vpack.c.b16 %v399, %v398
      %v410 = vpack.c.b16 %v401, %v400
      %v411 = vpack.c.b16 %v403, %v402
      %420 = vmatprep.subr.bf16.mxu0 0
      %421 = vmatpush1.bf16.msra.mxu0 %v404
      %422 = vmatprep.subr.bf16.mxu0 0
      %423 = vmatpush1.bf16.msra.mxu0 %v405
      %424 = vmatprep.subr.bf16.mxu0 0
      %425 = vmatpush1.bf16.msra.mxu0 %v406
      %426 = vmatprep.subr.bf16.mxu0 0
      %427 = vmatpush1.bf16.msra.mxu0 %v407
      %428 = vmatprep.subr.bf16.mxu0 0
      %429 = vmatpush1.bf16.msra.mxu0 %v408
      %430 = vmatprep.subr.bf16.mxu0 0
      %431 = vmatpush1.bf16.msra.mxu0 %v409
      %432 = vmatprep.subr.bf16.mxu0 0
      %433 = vmatpush1.bf16.msra.mxu0 %v410
      %434 = vmatprep.subr.bf16.mxu0 0
      %435 = vmatpush1.bf16.msra.mxu0 %v411
      %436 = vmatprep.subr.bf16.mxu0 0
      %437 = vmatpush1.bf16.msra.mxu0 0
      %438 = vmatprep.subr.bf16.mxu0 0
      %439 = vmatpush1.bf16.msra.mxu0 0
      %440 = vmatprep.subr.bf16.mxu0 0
      %441 = vmatpush1.bf16.msra.mxu0 0
      %442 = vmatprep.subr.bf16.mxu0 0
      %443 = vmatpush1.bf16.msra.mxu0 0
      %444 = vmatprep.subr.bf16.mxu0 0
      %445 = vmatpush1.bf16.msra.mxu0 0
      %446 = vmatprep.subr.bf16.mxu0 0
      %447 = vmatpush1.bf16.msra.mxu0 0
      %448 = vmatprep.subr.bf16.mxu0 0
      %449 = vmatpush1.bf16.msra.mxu0 0
      %450 = vmatprep.subr.bf16.mxu0 0
      %451 = vmatpush1.bf16.msra.mxu0 0
      %452 = vmatprep.mubr.bf16.mxu0 0
      %453 = vmatmul.mubr.bf16.gmra.mrb[0].mxu0 %v348
      %v454 = vpop.f32.mrb[0].mxu0
      %v455 = vadd.f32 %v370, %v454
      %v456 = vpop.f32.mrb[0].mxu0
      %v457 = vpop.f32.mrb[0].mxu0
      %v458 = vadd.f32 %v370, %v457
      %v459 = vpop.f32.mrb[0].mxu0
      %460 = vdwg.mxu0
      %v461 = vmax.f32 %v455, 0.0
      %v462 = vmax.f32 %v458, 0.0
      %v463 = vpack.c.bf16 %v462, %v461
      %v464 = vld [vmem:[%s5] sm:$0xf]
      %v465 = vld [vmem:[%s5 + $0x4] sm:$0xf]
      %v466 = vld [vmem:[%s5 + $0x8] sm:$0xf]
      %v467 = vld [vmem:[%s5 + $0xc] sm:$0xf]
      %v468 = vld [vmem:[%s5 + $0x10] sm:$0xf]
      %v469 = vld [vmem:[%s5 + $0x14] sm:$0xf]
      %v470 = vld [vmem:[%s5 + $0x18] sm:$0xf]
      %v471 = vld [vmem:[%s5 + $0x1c] sm:$0xf]
      %v472 = vld [vmem:[%s5 + $0x20] sm:$0xf]
      %v473 = vld [vmem:[%s5 + $0x24] sm:$0xf]
      %v474 = vld [vmem:[%s5 + $0x28] sm:$0xf]
      %v475 = vld [vmem:[%s5 + $0x2c] sm:$0xf]
      %v476 = vld [vmem:[%s5 + $0x30] sm:$0xf]
      %v477 = vld [vmem:[%s5 + $0x34] sm:$0xf]
      %v478 = vld [vmem:[%s5 + $0x38] sm:$0xf]
      %v479 = vld [vmem:[%s5 + $0x3c] sm:$0xf]
      %v480 = vld [vmem:[%s6] sm:$0x1]
      %v482 = vlaneseq
      %v483 = vshrl.u32 %v482, 7
      %v484 = vsub.s32 0, %v483
      %v485 = vrot.slane %v480, %v484
      %v503 = vunpack.c.l.b16 %v464
      %v504 = vunpack.c.l.b16 %v465
      %v505 = vunpack.c.l.b16 %v466
      %v506 = vunpack.c.l.b16 %v467
      %v507 = vunpack.c.l.b16 %v468
      %v508 = vunpack.c.l.b16 %v469
      %v509 = vunpack.c.l.b16 %v470
      %v510 = vunpack.c.l.b16 %v471
      %v511 = vunpack.c.l.b16 %v472
      %v512 = vunpack.c.l.b16 %v473
      %v513 = vunpack.c.l.b16 %v474
      %v514 = vunpack.c.l.b16 %v475
      %v515 = vunpack.c.l.b16 %v476
      %v516 = vunpack.c.l.b16 %v477
      %v517 = vunpack.c.l.b16 %v478
      %v518 = vunpack.c.l.b16 %v479
      %v519 = vpack.c.b16 %v504, %v503
      %v520 = vpack.c.b16 %v506, %v505
      %v521 = vpack.c.b16 %v508, %v507
      %v522 = vpack.c.b16 %v510, %v509
      %v523 = vpack.c.b16 %v512, %v511
      %v524 = vpack.c.b16 %v514, %v513
      %v525 = vpack.c.b16 %v516, %v515
      %v526 = vpack.c.b16 %v518, %v517
      %535 = vmatprep.subr.bf16.mxu0 0
      %536 = vmatpush1.bf16.msra.mxu0 %v519
      %537 = vmatprep.subr.bf16.mxu0 0
      %538 = vmatpush1.bf16.msra.mxu0 %v520
      %539 = vmatprep.subr.bf16.mxu0 0
      %540 = vmatpush1.bf16.msra.mxu0 %v521
      %541 = vmatprep.subr.bf16.mxu0 0
      %542 = vmatpush1.bf16.msra.mxu0 %v522
      %543 = vmatprep.subr.bf16.mxu0 0
      %544 = vmatpush1.bf16.msra.mxu0 %v523
      %545 = vmatprep.subr.bf16.mxu0 0
      %546 = vmatpush1.bf16.msra.mxu0 %v524
      %547 = vmatprep.subr.bf16.mxu0 0
      %548 = vmatpush1.bf16.msra.mxu0 %v525
      %549 = vmatprep.subr.bf16.mxu0 0
      %550 = vmatpush1.bf16.msra.mxu0 %v526
      %551 = vmatprep.subr.bf16.mxu0 0
      %552 = vmatpush1.bf16.msra.mxu0 0
      %553 = vmatprep.subr.bf16.mxu0 0
      %554 = vmatpush1.bf16.msra.mxu0 0
      %555 = vmatprep.subr.bf16.mxu0 0
      %556 = vmatpush1.bf16.msra.mxu0 0
      %557 = vmatprep.subr.bf16.mxu0 0
      %558 = vmatpush1.bf16.msra.mxu0 0
      %559 = vmatprep.subr.bf16.mxu0 0
      %560 = vmatpush1.bf16.msra.mxu0 0
      %561 = vmatprep.subr.bf16.mxu0 0
      %562 = vmatpush1.bf16.msra.mxu0 0
      %563 = vmatprep.subr.bf16.mxu0 0
      %564 = vmatpush1.bf16.msra.mxu0 0
      %565 = vmatprep.subr.bf16.mxu0 0
      %566 = vmatpush1.bf16.msra.mxu0 0
      %567 = vmatprep.mubr.bf16.mxu0 0
      %568 = vmatmul.mubr.bf16.gmra.mrb[0].mxu0 %v463
      %v569 = vpop.f32.mrb[0].mxu0
      %v570 = vadd.f32 %v485, %v569
      %v571 = vpop.f32.mrb[0].mxu0
      %v572 = vpop.f32.mrb[0].mxu0
      %v573 = vadd.f32 %v485, %v572
      %v574 = vpop.f32.mrb[0].mxu0
      %575 = vdwg.mxu0
      %v576 = vpack.c.bf16 %v573, %v570
      %v578 = vunpack.c.l.b16 %v576
      %v579 = vunpack.c.h.b16 %v576
      %v580 = vpack.c.b16 %v578, %v578
      %v581 = vpack.c.b16 %v579, %v579
      %584 = vst [vmem:[%s280] sm:$0xf] %v580
      %585 = vst [vmem:[%s280 + $0x4] sm:$0xf] %v581
      %s586 = smul.u32 2, %s18
      %p587 = scmp.lt.s32.totalorder %s586, 3
      %s588 = scalar_select %p587, %s586, 3
      %s589 = smul.addr %s588, 4
      %s590 = scalar_lea.vmem %s7, %s589
      // Predicated region
      $region49: #{_forward.1} parent=47 // pred_check
        %p591 = pneg %p188
      $region50: #{_forward.1} parent=47 // pred_check_branch
        %593 = sbr.rel (%p591) target = $region52
      $region51: #{_forward.1} parent=47 // pred_region
        %s594 = smul.u32 2, %s18
      $region52: #{_forward.1} parent=47 // pred_fallthru
        _
    $region48: #{_forward.1} parent=5 // pred_fallthru
      _
    %p595 = scmp.le.s32.totalorder 2, %s13
    // Predicated region
    $region53: #{_forward.1} parent=5 // pred_check
      %p596 = pneg %p595
    $region54: #{_forward.1} parent=5 // pred_check_branch
      %598 = sbr.rel (%p596) target = $region56
    $region55: #{_forward.1} parent=5 // pred_region
      %s599 = ssub.s32 %s13, 2
      // Predicated region
      $region57: #{_forward.1} parent=55 // pred_check
        %p600 = pneg %p194
      $region58: #{_forward.1} parent=55 // pred_check_branch
        %602 = sbr.rel (%p600) target = $region60
      $region59: #{_forward.1} parent=55 // pred_region
        %s603 = smul.u32 2, %s19
        %p604 = scmp.lt.s32.totalorder %s603, 3
        %s605 = scalar_select %p604, %s603, 3
        %s606 = smul.addr %s605, 4
        %s607 = scalar_lea.vmem %s7, %s606
      $region60: #{_forward.1} parent=55 // pred_fallthru
        _
    $region56: #{_forward.1} parent=5 // pred_fallthru
      _
  $region6: #{_forward.1} parent=0 // loop_footer
    %s17 = sadd.s32 1, %s13
  $region7: #{_forward.1} parent=0 // loop_footer_branch
    %12 = sbr.rel target = $region3
  $region8: #{_forward.1} parent=0 // loop_exit
    _

</llo_original>
